<compile_context>
chip_gen: v5e
topology: v5e:2x2
jax: 0.10.0
libtpu: 0.0.40
codegen_flags: <defaults>
</compile_context>

<pallas_src>
import functools

import jax
import jax.numpy as jnp
from jax.experimental import pallas as pl
from jax.experimental.pallas import tpu as pltpu

EPS = 1e-8
VMEM_BUDGET = 24 * 1024 * 1024           # conservative across v5e/v6e/v7x
RESIDENT_WEIGHT_BYTES = 8 * 1024 * 1024  # single-buffered resident-weight cap


def _round_up(x, m):
    return (x + m - 1) // m * m


def _cdiv(a, b):
    return (a + b - 1) // b


def _choose_tm(m, per_row_bytes, budget_bytes):
    """Row tile: power-of-two multiple of 8, <= 512, >= 2 tiles when possible
    (feeds both v7x TensorCores), and fits the VMEM budget."""
    tm = 512
    while tm > 8 and tm >= 2 * _round_up(m, 8):
        tm //= 2
    while tm > 8 and _cdiv(m, tm) < 2:
        tm //= 2
    while tm > 8 and tm * per_row_bytes > budget_bytes:
        tm //= 2
    return tm


def _l2_normalize(feats):
    """X / (sqrt(sum(X^2, -1)) + eps) -- same eps placement as torch l2norm."""
    norm = jnp.sqrt(jnp.sum(feats * feats, axis=-1, keepdims=True)) + EPS
    # EUP approximate reciprocal + one Newton-Raphson step instead of an exact
    # VALU divide (~1e-7 relative error, far inside the 1e-5 tolerance).
    r = pl.reciprocal(norm, approx=True)
    r = r * (2.0 - norm * r)
    return feats * r


def _resident_kernel(x_ref, w_ref, b_ref, o_ref, *, normalize):
    """grid = (row_tiles,); the whole (K, N_pad) weight stays VMEM-resident."""
    feats = jnp.dot(x_ref[...], w_ref[...], preferred_element_type=jnp.float32)
    feats = feats + b_ref[...]                       # (TM, N) + (1, N)
    if normalize:
        feats = _l2_normalize(feats)
    o_ref[...] = feats.astype(o_ref.dtype)


def _ktiled_kernel(x_ref, w_ref, b_ref, o_ref, *, normalize):
    """grid = (row_tiles, k_tiles); accumulate straight into the f32 output."""
    k = pl.program_id(1)

    @pl.when(k == 0)
    def _():
        # Fold the bias into the accumulator at the first K step.
        o_ref[...] = jnp.broadcast_to(b_ref[...], o_ref.shape)

    o_ref[...] += jnp.dot(x_ref[...], w_ref[...],
                          preferred_element_type=jnp.float32)

    if normalize:
        @pl.when(k == pl.num_programs(1) - 1)
        def _():
            o_ref[...] = _l2_normalize(o_ref[...])


@functools.partial(
    jax.jit, static_argnames=("no_imgnorm", "use_bf16_matmul", "force_ktiled"))
def encoder_image_forward(images, v, g, b, no_imgnorm=False,
                          use_bf16_matmul=False, force_ktiled=False):
    """images: (..., img_dim) float32 -> (..., embed_size) float32."""
    orig_shape = images.shape
    K = orig_shape[-1]
    N = v.shape[0]
    x = images.reshape(-1, K)
    M = x.shape[0]

    # weight_norm(nn.Linear, dim=None): W = g * V / ||V||_F  (scalar g).
    w_eff = (g / jnp.sqrt(jnp.sum(v * v))) * v       # (N, K), tiny
    w_t = w_eff.T                                    # (K, N): lane-dense output

    N_pad = _round_up(N, 128)                        # lane-dense last dim
    w_p = jnp.pad(w_t, ((0, 0), (0, N_pad - N)))     # zero cols don't change L2
    b_p = jnp.pad(b, (0, N_pad - N)).reshape(1, N_pad)

    in_dtype = jnp.bfloat16 if use_bf16_matmul else x.dtype
    esize = 2 if use_bf16_matmul else 4
    weight_bytes = K * N_pad * esize
    resident = (weight_bytes <= RESIDENT_WEIGHT_BYTES) and not force_ktiled
    normalize = not no_imgnorm

    if resident:
        # ---- fast path: weight VMEM-resident, no K grid axis ----------------
        x_in = x.astype(in_dtype)                    # no M pad, no K pad
        w_in = w_p.astype(in_dtype)
        per_row = 2 * K * esize + 2 * N_pad * 4      # x (2 bufs) + out (2 bufs)
        budget = VMEM_BUDGET - weight_bytes - N_pad * 4
        TM = _choose_tm(M, per_row, budget)
        if use_bf16_matmul and TM < 16:
            TM = 16
        grid = (_cdiv(M, TM),)
        in_specs = [
            pl.BlockSpec((TM, K), lambda i: (i, 0)),
            # Constant block index + single buffer: fetched from HBM once.
            pl.BlockSpec((K, N_pad), lambda i: (0, 0),
                         pipeline_mode=pl.Buffered(1)),
            pl.BlockSpec((1, N_pad), lambda i: (0, 0),
                         pipeline_mode=pl.Buffered(1)),
        ]
        out_specs = pl.BlockSpec((TM, N_pad), lambda i: (i, 0))
        dims = ("parallel",)
        kernel = functools.partial(_resident_kernel, normalize=normalize)
        vmem_est = (2 * TM * K * esize + weight_bytes + N_pad * 4
                    + 2 * TM * N_pad * 4)
    else:
        # ---- fallback: K-tiled reduction, accumulate into the f32 output ----
        TK = min(512, _round_up(K, 128))
        while TK > 128 and 2 * TK * N_pad * esize > VMEM_BUDGET // 2:
            TK = _round_up(TK // 2, 128)             # keep a multiple of 128
        K_pad = _round_up(K, TK)
        x_in = jnp.pad(x, ((0, 0), (0, K_pad - K))).astype(in_dtype)  # K pad only
        w_in = jnp.pad(w_p, ((0, K_pad - K), (0, 0))).astype(in_dtype)
        per_row = 2 * TK * esize + 2 * N_pad * 4
        budget = max(VMEM_BUDGET - 2 * TK * N_pad * esize - N_pad * 4, 1)
        TM = _choose_tm(M, per_row, budget)
        if use_bf16_matmul and TM < 16:
            TM = 16
        grid = (_cdiv(M, TM), K_pad // TK)
        in_specs = [
            pl.BlockSpec((TM, TK), lambda i, k: (i, k)),
            pl.BlockSpec((TK, N_pad), lambda i, k: (k, 0)),
            pl.BlockSpec((1, N_pad), lambda i, k: (0, 0),
                         pipeline_mode=pl.Buffered(1)),
        ]
        out_specs = pl.BlockSpec((TM, N_pad), lambda i, k: (i, 0))
        dims = ("parallel", "arbitrary")
        kernel = functools.partial(_ktiled_kernel, normalize=normalize)
        vmem_est = (2 * TM * TK * esize + 2 * TK * N_pad * esize + N_pad * 4
                    + 2 * TM * N_pad * 4)

    cp_kwargs = dict(dimension_semantics=dims)
    if vmem_est > 16 * 1024 * 1024:       # above v5e's 16 MiB scoped default
        cp_kwargs["vmem_limit_bytes"] = int(vmem_est * 1.25) + (2 << 20)

    out = pl.pallas_call(
        kernel,
        out_shape=jax.ShapeDtypeStruct((M, N_pad), jnp.float32),
        grid_spec=pltpu.PrefetchScalarGridSpec(
            num_scalar_prefetch=0,
            grid=grid,
            in_specs=in_specs,
            out_specs=out_specs,
        ),
        compiler_params=pltpu.CompilerParams(**cp_kwargs),
    )(x_in, w_in, b_p)

    out = out[:M, :N]                      # drop lane padding + tail rows
    return out.reshape(orig_shape[:-1] + (N,))


class EncoderImageWeightNormPrecompPallas:
    """Mirror of the PyTorch `EncoderImageWeightNormPrecomp` (synthetic params)."""

    def __init__(self, img_dim, embed_size, no_imgnorm=False, seed=0):
        self.embed_size = embed_size
        self.no_imgnorm = no_imgnorm
        kv, kb = jax.random.split(jax.random.PRNGKey(seed))
        bound = 1.0 / (img_dim ** 0.5)
        # nn.Linear-style init for the direction tensor V (embed_size, img_dim).
        self.v = jax.random.uniform(
            kv, (embed_size, img_dim), jnp.float32, -bound, bound)
        # weight_norm(dim=None) initializes g = ||V||_F so W == V initially.
        self.g = jnp.sqrt(jnp.sum(self.v * self.v))
        self.b = jax.random.uniform(kb, (embed_size,), jnp.float32, -bound, bound)
        # TODO(synk): load_state_dict is host-side parameter plumbing, not a kernel.

    def forward(self, images):
        return encoder_image_forward(
            images, self.v, self.g, self.b, no_imgnorm=self.no_imgnorm)


def _reference(images, v, g, b, no_imgnorm):
    w = (g / jnp.sqrt(jnp.sum(v * v))) * v
    feats = images @ w.T + b
    if not no_imgnorm:
        norm = jnp.sqrt(jnp.sum(feats * feats, axis=-1, keepdims=True)) + EPS
        feats = feats / norm
    return feats


if __name__ == "__main__":
    key = jax.random.PRNGKey(0)
    kx1, kx2, kx3 = jax.random.split(key, 3)

    # 1) Resident-weight fast path, both imgnorm settings.  img_dim/embed are
    #    deliberately off the 128 grid to exercise the weight/bias lane pad.
    B, R, IMG_DIM, EMBED = 2, 4, 36, 48
    images = jax.random.normal(kx1, (B, R, IMG_DIM), jnp.float32)
    for no_imgnorm in (False, True):
        model = EncoderImageWeightNormPrecompPallas(
            IMG_DIM, EMBED, no_imgnorm=no_imgnorm, seed=0)
        feats = jax.block_until_ready(model.forward(images))
        ref = _reference(images, model.v, model.g, model.b, no_imgnorm)
        assert feats.shape == (B, R, EMBED)
        assert jnp.allclose(feats, ref, atol=1e-5, rtol=1e-5), ("resident", no_imgnorm)

    # 2) Resident path with a partial tail row tile (M = 15, TM = 8): checks
    #    that dropping the M pad (cdiv grid + final slice) is correct.
    images2 = jax.random.normal(kx2, (3, 5, IMG_DIM), jnp.float32)
    model2 = EncoderImageWeightNormPrecompPallas(IMG_DIM, EMBED, seed=1)
    feats2 = jax.block_until_ready(model2.forward(images2))
    ref2 = _reference(images2, model2.v, model2.g, model2.b, False)
    assert feats2.shape == (3, 5, EMBED)
    assert jnp.allclose(feats2, ref2, atol=1e-5, rtol=1e-5), "partial rows"

    # 3) K-tiled fallback (forced at small shapes): bias fold at k == 0,
    #    accumulation into the f32 output across 2 K steps, in-place L2 norm.
    IMG_DIM3 = 520
    images3 = jax.random.normal(kx3, (2, 4, IMG_DIM3), jnp.float32)
    model3 = EncoderImageWeightNormPrecompPallas(IMG_DIM3, EMBED, seed=2)
    feats3 = jax.block_until_ready(
        encoder_image_forward(images3, model3.v, model3.g, model3.b,
                              no_imgnorm=False, force_ktiled=True))
    ref3 = _reference(images3, model3.v, model3.g, model3.b, False)
    assert feats3.shape == (2, 4, EMBED)
    assert jnp.allclose(feats3, ref3, atol=1e-5, rtol=1e-5), "ktiled"

    print("KERNEL_OK")
</pallas_src>

<mosaic_0001>
module attributes {stable_mosaic.version = 11 : i64} {
  func.func @_resident_kernel(%arg0: i32, %arg1: memref<8x36xf32, #tpu.memory_space<vmem>>, %arg2: memref<36x128xf32, #tpu.memory_space<vmem>>, %arg3: memref<1x128xf32, #tpu.memory_space<vmem>>, %arg4: memref<8x128xf32, #tpu.memory_space<vmem>>) attributes {dimension_semantics = [#tpu.dimension_semantics<parallel>], iteration_bounds = array<i64: 1>, scalar_prefetch = 0 : i64, scratch_operands = 0 : i64, tpu.core_type = #tpu.core_type<tc>, window_params = [{transform_indices = @transform_0, window_bounds = array<i64: 8, 36>}, {pipeline_mode = #tpu.pipeline_mode<synchronous>, transform_indices = @transform_1, window_bounds = array<i64: 36, 128>}, {pipeline_mode = #tpu.pipeline_mode<synchronous>, transform_indices = @transform_2, window_bounds = array<i64: 1, 128>}, {transform_indices = @transform_3, window_bounds = array<i64: 8, 128>}]} {
    %c0 = arith.constant 0 : index
    %c0_0 = arith.constant 0 : index
    %0 = vector.load %arg1[%c0, %c0_0] : memref<8x36xf32, #tpu.memory_space<vmem>>, vector<8x36xf32>
    %c0_1 = arith.constant 0 : index
    %c0_2 = arith.constant 0 : index
    %1 = vector.load %arg2[%c0_1, %c0_2] : memref<36x128xf32, #tpu.memory_space<vmem>>, vector<36x128xf32>
    %cst = arith.constant dense<0.000000e+00> : vector<8x128xf32>
    %2 = tpu.matmul %0, %1, %cst {dimension_numbers = #tpu.dot_dimension_numbers<[1], [0], [0], [1], [0, 0, 1, 1], [], []>} : vector<8x36xf32>, vector<36x128xf32>, vector<8x128xf32> -> vector<8x128xf32>
    %c0_3 = arith.constant 0 : index
    %c0_4 = arith.constant 0 : index
    %3 = vector.load %arg3[%c0_3, %c0_4] : memref<1x128xf32, #tpu.memory_space<vmem>>, vector<1x128xf32>
    %4 = vector.broadcast %3 : vector<1x128xf32> to vector<8x128xf32>
    %5 = arith.addf %2, %4 : vector<8x128xf32>
    %6 = arith.mulf %5, %5 : vector<8x128xf32>
    %cst_5 = arith.constant dense<0.000000e+00> : vector<8xf32>
    %7 = vector.multi_reduction <add>, %6, %cst_5 [1] : vector<8x128xf32> to vector<8xf32>
    %8 = vector.shape_cast %7 : vector<8xf32> to vector<8x1xf32>
    %9 = math.sqrt %8 : vector<8x1xf32>
    %cst_6 = arith.constant 9.99999993E-9 : f32
    %10 = vector.broadcast %cst_6 : f32 to vector<8x1xf32>
    %11 = arith.addf %9, %10 : vector<8x1xf32>
    %12 = tpu.reciprocal %11 {approx = true} : vector<8x1xf32> -> vector<8x1xf32>
    %13 = arith.mulf %11, %12 : vector<8x1xf32>
    %cst_7 = arith.constant 2.000000e+00 : f32
    %14 = vector.broadcast %cst_7 : f32 to vector<8x1xf32>
    %15 = arith.subf %14, %13 : vector<8x1xf32>
    %16 = arith.mulf %12, %15 : vector<8x1xf32>
    %17 = vector.broadcast %16 : vector<8x1xf32> to vector<8x128xf32>
    %18 = arith.mulf %5, %17 : vector<8x128xf32>
    %c0_8 = arith.constant 0 : index
    %c0_9 = arith.constant 0 : index
    %19 = vector.load %arg4[%c0_8, %c0_9] : memref<8x128xf32, #tpu.memory_space<vmem>>, vector<8x128xf32>
    tpu.vector_store %arg4[%c0_8, %c0_9], %18 {strides = array<i32>} : memref<8x128xf32, #tpu.memory_space<vmem>>, vector<8x128xf32>,
    return
  }
  func.func @transform_0(%arg0: i32) -> (i32, i32) {
    %c0_i32 = arith.constant 0 : i32
    %c0_i32_0 = arith.constant 0 : i32
    return %arg0, %c0_i32 : i32, i32
  }
  func.func @transform_1(%arg0: i32) -> (i32, i32) {
    %c0_i32 = arith.constant 0 : i32
    %c0_i32_0 = arith.constant 0 : i32
    %c0_i32_1 = arith.constant 0 : i32
    return %c0_i32, %c0_i32_0 : i32, i32
  }
  func.func @transform_2(%arg0: i32) -> (i32, i32) {
    %c0_i32 = arith.constant 0 : i32
    %c0_i32_0 = arith.constant 0 : i32
    %c0_i32_1 = arith.constant 0 : i32
    return %c0_i32, %c0_i32_0 : i32, i32
  }
  func.func @transform_3(%arg0: i32) -> (i32, i32) {
    %c0_i32 = arith.constant 0 : i32
    %c0_i32_0 = arith.constant 0 : i32
    return %arg0, %c0_i32 : i32, i32
  }
}

</mosaic_0001>

<llo_original>
// kernel: encoder_image_forward.1
$region0: #{encoder_image_forward.1}
  #allocation0 [shape = 'u32[]', space=smem, size = 0x4, offset = 0x4, fixed_abs, tag = 'smem constant byte address 0x4 - core index']
  #allocation1 [shape = 'u32[72,128]{1,0:T(1,128)}', space=vmem, size = 0x9000, scoped, tag = 'internal scratch']
  %s0 = inlined_call_operand.vmem [shape: f32[8,36], index: 0, kind: input, shape index: {}]
  %s1 = inlined_call_operand.vmem [shape: f32[36,128], index: 1, kind: input, shape index: {}]
  %s2 = inlined_call_operand.vmem [shape: f32[1,128], index: 2, kind: input, shape index: {}]
  %s3 = inlined_call_operand.hbm [shape: f32[8,128], index: 3, kind: output, shape index: {}]
  %s4 = sld [smem:[#allocation0]]
  $region22: #{encoder_image_forward.1} parent=0
    _
  %s6 = ssub.s32 1, %s4
  %s7 = scalar_select 0, %s6, %s4
  $region1: #{encoder_image_forward.1} parent=0
    #allocation2 [shape = 'u8[4096]{0}', space=vmem, size = 0x1000, scoped, tag = 'output window, operand 0, single buffered']
    #allocation3 [shape = 's32[1]{0}', space=sflag, size = 0x4, scoped, tag = 'scoped memory for encoder_image_forward.1']
    %8 = vsyncpa [#allocation3], 0
    // Predicated region
    $region2: #{encoder_image_forward.1} parent=1 // pred_check
      _
    $region3: #{encoder_image_forward.1} parent=1 // pred_check_branch
      %10 = sbr.rel (0) target = $region5
    $region4: #{encoder_image_forward.1} parent=1 // pred_region
      _
    $region5: #{encoder_image_forward.1} parent=1 // pred_fallthru
      _
    // Predicated region
    $region6: #{encoder_image_forward.1} parent=1 // pred_check
      _
    $region7: #{encoder_image_forward.1} parent=1 // pred_check_branch
      %12 = sbr.rel (0) target = $region9
    $region8: #{encoder_image_forward.1} parent=1 // pred_region
      _
    $region9: #{encoder_image_forward.1} parent=1 // pred_fallthru
      _
    // Predicated region
    $region10: #{encoder_image_forward.1} parent=1 // pred_check
      _
    $region11: #{encoder_image_forward.1} parent=1 // pred_check_branch
      %14 = sbr.rel (0) target = $region13
    $region12: #{encoder_image_forward.1} parent=1 // pred_region
      _
    $region13: #{encoder_image_forward.1} parent=1 // pred_fallthru
      _
    %v15 = vld [vmem:[%s0] sm:$0xff]
    %v16 = vld [vmem:[%s1] sm:$0xff]
    %v17 = vld [vmem:[%s1 + $0x8] sm:$0xff]
    %v18 = vld [vmem:[%s1 + $0x10] sm:$0xff]
    %v19 = vld [vmem:[%s1 + $0x18] sm:$0xff]
    %v20 = vld [vmem:[%s1 + $0x20] sm:$0xf]
    %v21 = vld [vmem:[%s2] sm:$0x1]
    %v23 = vperm.slane %v21, 0
    %vm25 = vcmask 293888
    %v27 = vsel %vm25, %v15, 0
    %vm29 = vcmask 1043456
    %v31 = vsel %vm29, %v20, 0
    %33 = vmatpush.msra.mxu0 0.0
    %34 = vmatpush.msra.mxu0 0.0
    %35 = vmatpush.msra.mxu0 0.0
    %36 = vmatpush.msra.mxu0 0.0
    %37 = vmatpush.msra.mxu0 0.0
    %38 = vmatpush.msra.mxu0 0.0
    %39 = vmatpush.msra.mxu0 0.0
    %40 = vmatpush.msra.mxu0 0.0
    %41 = vmatpush.msra.mxu0 0.0
    %42 = vmatpush.msra.mxu0 0.0
    %43 = vmatpush.msra.mxu0 0.0
    %44 = vmatpush.msra.mxu0 %v31
    %45 = vmatpush.msra.mxu0 %v19
    %46 = vmatpush.msra.mxu0 %v18
    %47 = vmatpush.msra.mxu0 %v17
    %48 = vmatpush.msra.mxu0 %v16
    %49 = vmatmul.f32.gmra.mxu0 %v27
    %v50 = vpop.f32.mrf.mxu0
    %v51 = vadd.f32 %v23, %v50
    %52 = vdwg.mxu0
    %v53 = vmul.f32 %v51, %v51
    %54 = vadd.xlane.f32.xlu0 %v53
    %v55 = vpop.xlane.xlu0 %54
    %v56 = vrsqrt.pop %v55
    %v57 = vmul.f32 %v56, %v55
    %v58 = vmul.f32 %v57, %v56
    %v59 = vmul.f32 0.5, %v58
    %v60 = vsub.f32 1.5, %v59
    %v61 = vmul.f32 %v56, %v60
    %v62 = vmul.f32 %v55, %v61
    %vm63 = vcmp.eq.f32.partialorder %v55, inf
    %v64 = vsel %vm63, %v55, %v62
    %vm65 = vcmp.eq.f32.partialorder %v55, 0.0
    %v66 = vand.u32 %v55, 2147483648
    %v67 = vsel %vm65, %v66, %v64
    %v68 = vadd.f32 %v67, 1e-08
    %v69 = vrcp.pop %v68
    %v70 = vmul.f32 %v68, %v69
    %v71 = vsub.f32 2.0, %v70
    %v72 = vmul.f32 %v69, %v71
    %v73 = vmul.f32 %v51, %v72
    %74 = vst [vmem:[#allocation2] sm:$0xff] %v73
    // Predicated region
    $region14: #{encoder_image_forward.1} parent=1 // pred_check
      _
    $region15: #{encoder_image_forward.1} parent=1 // pred_check_branch
      %76 = sbr.rel (0) target = $region17
    $region16: #{encoder_image_forward.1} parent=1 // pred_region
      %78 = vsyncadd [#allocation3], 0
      %s80 = sshll.u32 [#allocation2], 4
      %s81 = int_to_ptr.vmem [resolvable:$true] %s80
      %s82 = sshll.u32 %s3, 4
      %s83 = int_to_ptr.hbm [resolvable:$true] %s82
      %85 = dma.vmem_to_hbm [thread:$0]  %s81, 128, %s83, [#allocation3]
    $region17: #{encoder_image_forward.1} parent=1 // pred_fallthru
      _
    // Predicated region
    $region18: #{encoder_image_forward.1} parent=1 // pred_check
      _
    $region19: #{encoder_image_forward.1} parent=1 // pred_check_branch
      %87 = sbr.rel (0) target = $region21
    $region20: #{encoder_image_forward.1} parent=1 // pred_region
      %89 = dma.done [#allocation3], 128
    $region21: #{encoder_image_forward.1} parent=1 // pred_fallthru
      _
    %90 = vsyncpa [#allocation3], 1

</llo_original>
